<compile_context>
chip_gen: v7x
topology: tpu7x:2x2x1
jax: 0.10.0
libtpu: 0.0.40
codegen_flags: <defaults>
</compile_context>

<pallas_src>
import jax
import jax.numpy as jnp
from jax.experimental import pallas as pl
from jax.experimental.pallas import tpu as pltpu

N_NODES = 16   # num_nodes
F_IN = 8       # input_dim
HID = 32       # hidden_dim
BN_EPS = 1e-5

# ---- packed-parameter slab layout: (P_ROWS, P_LANES) f32, one DMA -----------
P_LANES = 128                      # = 4*HID
R_RHS1 = 0                         # rows   0: 32, lanes 0:128  [W2 | Wih1_h1] fused RHS
R_WIH1H2 = 32                      # rows  32: 64, lanes 0:96   Wih1 h2-rows (BN2 folded), gates [i,g,o]
R_WIH2 = 64                        # rows  64: 96, lanes 0:96   Wih2, gates [i,g,o]
R_W1PAD = 96                       # rows  96:224, lanes 0:32   W1 padded to 128 rows (X lanes 2H:2H+F)
R_B1 = 224                         # the six bias/BN rows below are pre-broadcast to N sublanes
R_BN1S = 240
R_BN1B = 256
R_B2 = 272
R_BL1 = 288                        # lanes 0:96 (bl1 + bn2_shift @ Wih1_h2)
R_BL2 = 304                        # lanes 0:96
P_ROWS = 320                       # multiple of 8

assert 4 * HID == P_LANES and 2 * HID + F_IN <= P_LANES and N_NODES <= 2 * HID


# -----------------------------------------------------------------------------
# Pallas kernel: GCN x2 + BN1 (eval) + two single-step LSTMs + lane-dense concat
# -----------------------------------------------------------------------------
def mpnn_lstm_kernel(ax_ref, p_ref, out_ref):
    H = HID
    N = N_NODES

    ax = ax_ref[...]                                    # (N, 128): lanes 0:N = A, 2H:2H+F = X
    a = ax[:, 0:N]                                      # (N, N) normalized adjacency

    # static slices from the packed parameter slab (single resident DMA)
    rhs1 = p_ref[R_RHS1:R_RHS1 + H, :]                  # (H, 4H)  [W2 | Wih1_h1]
    wih1_h2 = p_ref[R_WIH1H2:R_WIH1H2 + H, 0:3 * H]     # (H, 3H)  BN2 folded
    wih2 = p_ref[R_WIH2:R_WIH2 + H, 0:3 * H]            # (H, 3H)
    w1pad = p_ref[R_W1PAD:R_W1PAD + P_LANES, 0:H]       # (128, H) rows 2H:2H+F carry W1
    b1 = p_ref[R_B1:R_B1 + N, 0:H]                      # all biases pre-broadcast to N rows
    bn1s = p_ref[R_BN1S:R_BN1S + N, 0:H]
    bn1b = p_ref[R_BN1B:R_BN1B + N, 0:H]
    b2 = p_ref[R_B2:R_B2 + N, 0:H]
    bl1 = p_ref[R_BL1:R_BL1 + N, 0:3 * H]
    bl2 = p_ref[R_BL2:R_BL2 + N, 0:3 * H]

    # ---- GCNConv 1: A @ (X W1) + b1, relu, BatchNorm (eval).  X @ W1 is computed
    #      directly from the packed (N,128) input against the row-padded W1.
    xw1 = jnp.dot(ax, w1pad, preferred_element_type=jnp.float32)          # (N, H) == X @ W1
    h1 = jnp.maximum(jnp.dot(a, xw1, preferred_element_type=jnp.float32) + b1, 0.0)
    h1 = h1 * bn1s + bn1b
    # TODO(synk): F.dropout(p=0.1, training=True) is stochastic; eval-mode identity used.

    # ---- Fused full-128-lane dot: lanes 0:H = H1@W2 (GCN2 pre-agg),
    #      lanes H:4H = H1's contribution to the LSTM1 gates [i,g,o].
    t = jnp.dot(h1, rhs1, preferred_element_type=jnp.float32)             # (N, 4H)

    # ---- GCNConv 2 (BN2 is folded into wih1_h2 / bl1 — exact, h2 only feeds LSTM1)
    h2 = jnp.maximum(jnp.dot(a, t[:, 0:H], preferred_element_type=jnp.float32) + b2, 0.0)

    # ---- LSTM 1 (seq_len=1, h0=c0=0); f gate dropped, order [i, g, o]
    g1 = t[:, H:4 * H] + jnp.dot(h2, wih1_h2, preferred_element_type=jnp.float32) + bl1
    c1 = jax.nn.sigmoid(g1[:, 0:H]) * jnp.tanh(g1[:, H:2 * H])
    hh1 = jax.nn.sigmoid(g1[:, 2 * H:3 * H]) * jnp.tanh(c1)

    # ---- LSTM 2 (seq_len=1, zero initial state)
    g2 = jnp.dot(hh1, wih2, preferred_element_type=jnp.float32) + bl2
    c2 = jax.nn.sigmoid(g2[:, 0:H]) * jnp.tanh(g2[:, H:2 * H])
    hh2 = jax.nn.sigmoid(g2[:, 2 * H:3 * H]) * jnp.tanh(c2)

    # ---- Lane-dense output: [hh1 | hh2 | X | 0].  X already sits at lanes 2H:2H+F
    #      of the packed input, so it is recovered with a mask + add (no lane shift).
    lane = jax.lax.broadcasted_iota(jnp.int32, ax.shape, 1)
    x_keep = jnp.where(lane >= 2 * H, ax, 0.0)           # lanes >= 2H+F are zero in ax
    pad = jnp.zeros((N, P_LANES - 2 * H), jnp.float32)
    out_ref[...] = jnp.concatenate([hh1, hh2, pad], axis=1) + x_keep


# -----------------------------------------------------------------------------
# Glue: scatter-free symmetric GCN normalization (one-hot matmuls) + pallas_call
# -----------------------------------------------------------------------------
def build_adjacency(edge_index, edge_weight, num_nodes):
    """Dense sym-normalized adjacency for B snapshots sharing edge_index.
    edge_weight: (B, E).  Built entirely with one-hot matmuls (no HLO scatter/gather)."""
    # TODO(synk): PyG add_remaining_self_loops skips nodes that already have self loops;
    #             this unconditionally appends them (double-counts pre-existing loops).
    loops = jnp.arange(num_nodes, dtype=edge_index.dtype)
    src = jnp.concatenate([edge_index[0], loops])
    dst = jnp.concatenate([edge_index[1], loops])
    oh_src = jax.nn.one_hot(src, num_nodes, dtype=jnp.float32)          # (E+N, N)
    oh_dst = jax.nn.one_hot(dst, num_nodes, dtype=jnp.float32)          # (E+N, N)

    ones = jnp.ones((edge_weight.shape[0], num_nodes), jnp.float32)
    w = jnp.concatenate([edge_weight, ones], axis=1)                    # (B, E+N)
    deg = w @ oh_dst                                                    # (B, N) in-degree
    dinv = jnp.where(deg > 0, jax.lax.rsqrt(deg), 0.0)                  # (B, N)
    norm = (dinv @ oh_src.T) * w * (dinv @ oh_dst.T)                    # (B, E+N)

    # A[b, i, j] = sum_e norm[b, e] [dst[e]==i][src[e]==j]
    return jnp.einsum("be,ei,ej->bij", norm, oh_dst, oh_src)            # (B, N, N)


@jax.jit
def mpnn_lstm_forward(x, edge_index, edge_weight, packed_params):
    """x: (B, N, F) node features for B graph snapshots; edge_weight: (B, E);
    edge_index: (2, E) shared structure.  Returns (B, N, 2H + F)."""
    b, n, f = x.shape
    a = build_adjacency(edge_index, edge_weight, n)                     # (B, N, N)

    # Lane-pack [A | 0 | X | 0] into one (B, N, 128) input (one DMA per grid block).
    ax = jnp.concatenate(
        [a,
         jnp.zeros((b, n, 2 * HID - n), jnp.float32),
         x,
         jnp.zeros((b, n, P_LANES - 2 * HID - f), jnp.float32)], axis=-1)

    flops_per_block = 2 * (n * P_LANES * HID       # ax @ w1pad
                           + n * n * HID           # A @ (X W1)
                           + n * HID * 4 * HID     # fused h1 @ [W2 | Wih1_h1]
                           + n * n * HID           # A @ (H1 W2)
                           + n * HID * 3 * HID     # h2 @ Wih1_h2
                           + n * HID * 3 * HID)    # hh1 @ Wih2
    cost = pl.CostEstimate(
        flops=int(b * flops_per_block),
        transcendentals=int(b * 8 * n * HID),       # 2 sigmoids + 2 tanhs per LSTM
        bytes_accessed=int(4 * (2 * b * n * P_LANES + P_ROWS * P_LANES)),
    )

    out = pl.pallas_call(
        mpnn_lstm_kernel,
        out_shape=jax.ShapeDtypeStruct((b, n, P_LANES), jnp.float32),
        grid=(b,),
        in_specs=[
            pl.BlockSpec((None, n, P_LANES), lambda i: (i, 0, 0)),       # per-snapshot [A|X]
            pl.BlockSpec((P_ROWS, P_LANES), lambda i: (0, 0)),           # params, fetched once
        ],
        out_specs=pl.BlockSpec((None, n, P_LANES), lambda i: (i, 0, 0)),
        compiler_params=pltpu.CompilerParams(dimension_semantics=("parallel",)),
        cost_estimate=cost,
    )(ax, packed_params)

    return out[:, :, :2 * HID + f]                                       # (B, N, 2H+F)


# -----------------------------------------------------------------------------
# Host-side parameter construction + packing into one (320, 128) slab
# -----------------------------------------------------------------------------
def init_params(key):
    ks = jax.random.split(key, 12)
    s = 0.1
    H, F, N = HID, F_IN, N_NODES

    # GCNConv 1 / 2 (lin weight stored (in, out); bias added after aggregation)
    w1 = s * jax.random.normal(ks[0], (F, H), jnp.float32)
    b1 = s * jax.random.normal(ks[1], (H,), jnp.float32)
    w2 = s * jax.random.normal(ks[2], (H, H), jnp.float32)
    b2 = s * jax.random.normal(ks[3], (H,), jnp.float32)

    # BatchNorm1d (eval): running_mean=0, running_var=1.
    # TODO(synk): for real checkpoints use scale=gamma/sqrt(running_var+eps),
    #             shift=beta-running_mean*scale.
    gamma1 = 1.0 + s * jax.random.normal(ks[4], (H,), jnp.float32)
    beta1 = s * jax.random.normal(ks[5], (H,), jnp.float32)
    gamma2 = 1.0 + s * jax.random.normal(ks[6], (H,), jnp.float32)
    beta2 = s * jax.random.normal(ks[7], (H,), jnp.float32)
    inv_std = 1.0 / jnp.sqrt(1.0 + BN_EPS)
    bn1_scale, bn1_shift = gamma1 * inv_std, beta1
    bn2_scale, bn2_shift = gamma2 * inv_std, beta2

    # LSTM weights in PyTorch gate order [i, f, g, o], stored transposed (in, 4H).
    # TODO(synk): b_ih + b_hh must be pre-summed when loading real checkpoints.
    wih1 = s * jax.random.normal(ks[8], (2 * H, 4 * H), jnp.float32)
    bl1 = s * jax.random.normal(ks[9], (4 * H,), jnp.float32)
    wih2 = s * jax.random.normal(ks[10], (H, 4 * H), jnp.float32)
    bl2 = s * jax.random.normal(ks[11], (4 * H,), jnp.float32)

    # Drop the dead 'f' gate (f * c0 == 0 at seq_len=1); keep [i, g, o] contiguous.
    def drop_f(m):
        return jnp.concatenate([m[..., 0:H], m[..., 2 * H:4 * H]], axis=-1)

    wih1_iogo = drop_f(wih1)                         # (2H, 3H)
    wih1_h1 = wih1_iogo[0:H]                         # h1 -> gates
    wih1_h2 = wih1_iogo[H:2 * H]                     # h2 -> gates
    # Exact BN2 fold: h2_bn @ W = relu_h2 @ (scale*W) + shift @ W  (h2 only feeds LSTM1).
    wih1_h2_f = bn2_scale[:, None] * wih1_h2
    bl1_f = drop_f(bl1) + bn2_shift @ wih1_h2
    wih2_iogo = drop_f(wih2)
    bl2_iogo = drop_f(bl2)

    def bcast(v):                                    # pre-broadcast biases to N sublanes
        return jnp.broadcast_to(v[None, :], (N, v.shape[0]))

    p = jnp.zeros((P_ROWS, P_LANES), jnp.float32)
    p = p.at[R_RHS1:R_RHS1 + H, 0:H].set(w2)                            # fused RHS lanes 0:H
    p = p.at[R_RHS1:R_RHS1 + H, H:4 * H].set(wih1_h1)                   # fused RHS lanes H:4H
    p = p.at[R_WIH1H2:R_WIH1H2 + H, 0:3 * H].set(wih1_h2_f)
    p = p.at[R_WIH2:R_WIH2 + H, 0:3 * H].set(wih2_iogo)
    p = p.at[R_W1PAD + 2 * H:R_W1PAD + 2 * H + F, 0:H].set(w1)          # W1 at X's lane rows
    p = p.at[R_B1:R_B1 + N, 0:H].set(bcast(b1))
    p = p.at[R_BN1S:R_BN1S + N, 0:H].set(bcast(bn1_scale))
    p = p.at[R_BN1B:R_BN1B + N, 0:H].set(bcast(bn1_shift))
    p = p.at[R_B2:R_B2 + N, 0:H].set(bcast(b2))
    p = p.at[R_BL1:R_BL1 + N, 0:3 * H].set(bcast(bl1_f))
    p = p.at[R_BL2:R_BL2 + N, 0:3 * H].set(bcast(bl2_iogo))
    return p


if __name__ == "__main__":
    key = jax.random.PRNGKey(0)
    k_x, k_w, k_p = jax.random.split(key, 3)

    B = 4  # graph snapshots / timesteps batched along the grid axis

    # Node features for B snapshots: (B, num_nodes, input_dim)
    x = jax.random.normal(k_x, (B, N_NODES, F_IN), jnp.float32)

    # Shared bidirectional ring graph on N_NODES nodes; per-snapshot edge weights
    idx = jnp.arange(N_NODES, dtype=jnp.int32)
    src = jnp.concatenate([idx, (idx + 1) % N_NODES])
    dst = jnp.concatenate([(idx + 1) % N_NODES, idx])
    edge_index = jnp.stack([src, dst], axis=0)                          # (2, 32)
    edge_weight = jax.random.uniform(k_w, (B, edge_index.shape[1]),
                                     jnp.float32, 0.5, 1.5)

    packed_params = init_params(k_p)

    out = mpnn_lstm_forward(x, edge_index, edge_weight, packed_params)
    out = jax.block_until_ready(out)

    assert out.shape == (B, N_NODES, 2 * HID + F_IN), out.shape
    assert bool(jnp.all(jnp.isfinite(out)))
    print("KERNEL_OK")
</pallas_src>

<mosaic_0001>
module attributes {stable_mosaic.version = 11 : i64} {
  func.func @mpnn_lstm_kernel(%arg0: i32, %arg1: memref<1x16x128xf32, #tpu.memory_space<vmem>>, %arg2: memref<320x128xf32, #tpu.memory_space<vmem>>, %arg3: memref<1x16x128xf32, #tpu.memory_space<vmem>>) attributes {dimension_semantics = [#tpu.dimension_semantics<parallel>], iteration_bounds = array<i64: 4>, scalar_prefetch = 0 : i64, scratch_operands = 0 : i64, tpu.core_type = #tpu.core_type<tc>, window_params = [{transform_indices = @transform_0, window_bounds = array<i64: 1, 16, 128>}, {pipeline_mode = #tpu.pipeline_mode<synchronous>, transform_indices = @transform_1, window_bounds = array<i64: 320, 128>}, {transform_indices = @transform_2, window_bounds = array<i64: 1, 16, 128>}]} {
    %c0 = arith.constant 0 : index
    %c0_0 = arith.constant 0 : index
    %c0_1 = arith.constant 0 : index
    %0 = vector.load %arg1[%c0, %c0_0, %c0_1] : memref<1x16x128xf32, #tpu.memory_space<vmem>>, vector<1x16x128xf32>
    %1 = vector.shape_cast %0 : vector<1x16x128xf32> to vector<16x128xf32>
    %2 = vector.extract_strided_slice %1 {offsets = [0, 0], sizes = [16, 16], strides = [1, 1]} : vector<16x128xf32> to vector<16x16xf32>
    %c0_2 = arith.constant 0 : index
    %c0_3 = arith.constant 0 : index
    %3 = vector.load %arg2[%c0_2, %c0_3] : memref<320x128xf32, #tpu.memory_space<vmem>>, vector<32x128xf32>
    %c32 = arith.constant 32 : index
    %c0_4 = arith.constant 0 : index
    %4 = vector.load %arg2[%c32, %c0_4] : memref<320x128xf32, #tpu.memory_space<vmem>>, vector<32x96xf32>
    %c64 = arith.constant 64 : index
    %c0_5 = arith.constant 0 : index
    %5 = vector.load %arg2[%c64, %c0_5] : memref<320x128xf32, #tpu.memory_space<vmem>>, vector<32x96xf32>
    %c96 = arith.constant 96 : index
    %c0_6 = arith.constant 0 : index
    %6 = vector.load %arg2[%c96, %c0_6] : memref<320x128xf32, #tpu.memory_space<vmem>>, vector<128x32xf32>
    %c224 = arith.constant 224 : index
    %c0_7 = arith.constant 0 : index
    %7 = vector.load %arg2[%c224, %c0_7] : memref<320x128xf32, #tpu.memory_space<vmem>>, vector<16x32xf32>
    %c240 = arith.constant 240 : index
    %c0_8 = arith.constant 0 : index
    %8 = vector.load %arg2[%c240, %c0_8] : memref<320x128xf32, #tpu.memory_space<vmem>>, vector<16x32xf32>
    %c256 = arith.constant 256 : index
    %c0_9 = arith.constant 0 : index
    %9 = vector.load %arg2[%c256, %c0_9] : memref<320x128xf32, #tpu.memory_space<vmem>>, vector<16x32xf32>
    %c272 = arith.constant 272 : index
    %c0_10 = arith.constant 0 : index
    %10 = vector.load %arg2[%c272, %c0_10] : memref<320x128xf32, #tpu.memory_space<vmem>>, vector<16x32xf32>
    %c288 = arith.constant 288 : index
    %c0_11 = arith.constant 0 : index
    %11 = vector.load %arg2[%c288, %c0_11] : memref<320x128xf32, #tpu.memory_space<vmem>>, vector<16x96xf32>
    %c304 = arith.constant 304 : index
    %c0_12 = arith.constant 0 : index
    %12 = vector.load %arg2[%c304, %c0_12] : memref<320x128xf32, #tpu.memory_space<vmem>>, vector<16x96xf32>
    %cst = arith.constant dense<0.000000e+00> : vector<16x32xf32>
    %13 = tpu.matmul %1, %6, %cst {dimension_numbers = #tpu.dot_dimension_numbers<[1], [0], [0], [1], [0, 0, 1, 1], [], []>} : vector<16x128xf32>, vector<128x32xf32>, vector<16x32xf32> -> vector<16x32xf32>
    %cst_13 = arith.constant dense<0.000000e+00> : vector<16x32xf32>
    %14 = tpu.matmul %2, %13, %cst_13 {dimension_numbers = #tpu.dot_dimension_numbers<[1], [0], [0], [1], [0, 0, 1, 1], [], []>} : vector<16x16xf32>, vector<16x32xf32>, vector<16x32xf32> -> vector<16x32xf32>
    %15 = arith.addf %14, %7 : vector<16x32xf32>
    %cst_14 = arith.constant 0.000000e+00 : f32
    %16 = vector.broadcast %cst_14 : f32 to vector<16x32xf32>
    %17 = arith.maximumf %15, %16 : vector<16x32xf32>
    %18 = arith.mulf %17, %8 : vector<16x32xf32>
    %19 = arith.addf %18, %9 : vector<16x32xf32>
    %cst_15 = arith.constant dense<0.000000e+00> : vector<16x128xf32>
    %20 = tpu.matmul %19, %3, %cst_15 {dimension_numbers = #tpu.dot_dimension_numbers<[1], [0], [0], [1], [0, 0, 1, 1], [], []>} : vector<16x32xf32>, vector<32x128xf32>, vector<16x128xf32> -> vector<16x128xf32>
    %21 = vector.extract_strided_slice %20 {offsets = [0, 0], sizes = [16, 32], strides = [1, 1]} : vector<16x128xf32> to vector<16x32xf32>
    %cst_16 = arith.constant dense<0.000000e+00> : vector<16x32xf32>
    %22 = tpu.matmul %2, %21, %cst_16 {dimension_numbers = #tpu.dot_dimension_numbers<[1], [0], [0], [1], [0, 0, 1, 1], [], []>} : vector<16x16xf32>, vector<16x32xf32>, vector<16x32xf32> -> vector<16x32xf32>
    %23 = arith.addf %22, %10 : vector<16x32xf32>
    %cst_17 = arith.constant 0.000000e+00 : f32
    %24 = vector.broadcast %cst_17 : f32 to vector<16x32xf32>
    %25 = arith.maximumf %23, %24 : vector<16x32xf32>
    %26 = vector.extract_strided_slice %20 {offsets = [0, 32], sizes = [16, 96], strides = [1, 1]} : vector<16x128xf32> to vector<16x96xf32>
    %cst_18 = arith.constant dense<0.000000e+00> : vector<16x96xf32>
    %27 = tpu.matmul %25, %4, %cst_18 {dimension_numbers = #tpu.dot_dimension_numbers<[1], [0], [0], [1], [0, 0, 1, 1], [], []>} : vector<16x32xf32>, vector<32x96xf32>, vector<16x96xf32> -> vector<16x96xf32>
    %28 = arith.addf %26, %27 : vector<16x96xf32>
    %29 = arith.addf %28, %11 : vector<16x96xf32>
    %30 = vector.extract_strided_slice %29 {offsets = [0, 0], sizes = [16, 32], strides = [1, 1]} : vector<16x96xf32> to vector<16x32xf32>
    %31 = arith.negf %30 : vector<16x32xf32>
    %32 = math.exp %31 : vector<16x32xf32>
    %cst_19 = arith.constant 1.000000e+00 : f32
    %33 = vector.broadcast %cst_19 : f32 to vector<16x32xf32>
    %34 = arith.addf %33, %32 : vector<16x32xf32>
    %35 = arith.divf %33, %34 : vector<16x32xf32>
    %36 = vector.extract_strided_slice %29 {offsets = [0, 32], sizes = [16, 32], strides = [1, 1]} : vector<16x96xf32> to vector<16x32xf32>
    %37 = math.tanh %36 : vector<16x32xf32>
    %38 = arith.mulf %35, %37 : vector<16x32xf32>
    %39 = vector.extract_strided_slice %29 {offsets = [0, 64], sizes = [16, 32], strides = [1, 1]} : vector<16x96xf32> to vector<16x32xf32>
    %40 = arith.negf %39 : vector<16x32xf32>
    %41 = math.exp %40 : vector<16x32xf32>
    %cst_20 = arith.constant 1.000000e+00 : f32
    %42 = vector.broadcast %cst_20 : f32 to vector<16x32xf32>
    %43 = arith.addf %42, %41 : vector<16x32xf32>
    %44 = arith.divf %42, %43 : vector<16x32xf32>
    %45 = math.tanh %38 : vector<16x32xf32>
    %46 = arith.mulf %44, %45 : vector<16x32xf32>
    %cst_21 = arith.constant dense<0.000000e+00> : vector<16x96xf32>
    %47 = tpu.matmul %46, %5, %cst_21 {dimension_numbers = #tpu.dot_dimension_numbers<[1], [0], [0], [1], [0, 0, 1, 1], [], []>} : vector<16x32xf32>, vector<32x96xf32>, vector<16x96xf32> -> vector<16x96xf32>
    %48 = arith.addf %47, %12 : vector<16x96xf32>
    %49 = vector.extract_strided_slice %48 {offsets = [0, 0], sizes = [16, 32], strides = [1, 1]} : vector<16x96xf32> to vector<16x32xf32>
    %50 = arith.negf %49 : vector<16x32xf32>
    %51 = math.exp %50 : vector<16x32xf32>
    %cst_22 = arith.constant 1.000000e+00 : f32
    %52 = vector.broadcast %cst_22 : f32 to vector<16x32xf32>
    %53 = arith.addf %52, %51 : vector<16x32xf32>
    %54 = arith.divf %52, %53 : vector<16x32xf32>
    %55 = vector.extract_strided_slice %48 {offsets = [0, 32], sizes = [16, 32], strides = [1, 1]} : vector<16x96xf32> to vector<16x32xf32>
    %56 = math.tanh %55 : vector<16x32xf32>
    %57 = arith.mulf %54, %56 : vector<16x32xf32>
    %58 = vector.extract_strided_slice %48 {offsets = [0, 64], sizes = [16, 32], strides = [1, 1]} : vector<16x96xf32> to vector<16x32xf32>
    %59 = arith.negf %58 : vector<16x32xf32>
    %60 = math.exp %59 : vector<16x32xf32>
    %cst_23 = arith.constant 1.000000e+00 : f32
    %61 = vector.broadcast %cst_23 : f32 to vector<16x32xf32>
    %62 = arith.addf %61, %60 : vector<16x32xf32>
    %63 = arith.divf %61, %62 : vector<16x32xf32>
    %64 = math.tanh %57 : vector<16x32xf32>
    %65 = arith.mulf %63, %64 : vector<16x32xf32>
    %66 = tpu.iota {dimensions = array<i32: 1>} : vector<16x128xi32>
    %c64_i32 = arith.constant 64 : i32
    %67 = vector.broadcast %c64_i32 : i32 to vector<16x128xi32>
    %68 = arith.cmpi sge, %66, %67 : vector<16x128xi32>
    %cst_24 = arith.constant 0.000000e+00 : f32
    %69 = vector.broadcast %cst_24 : f32 to vector<16x128xf32>
    %70 = arith.select %68, %1, %69 : vector<16x128xi1>, vector<16x128xf32>
    %cst_25 = arith.constant 0.000000e+00 : f32
    %71 = vector.broadcast %cst_25 : f32 to vector<16x64xf32>
    %72 = tpu.concatenate %46, %65, %71 in 1 : vector<16x32xf32>, vector<16x32xf32>, vector<16x64xf32> -> vector<16x128xf32>
    %73 = arith.addf %72, %70 : vector<16x128xf32>
    %c0_26 = arith.constant 0 : index
    %c0_27 = arith.constant 0 : index
    %c0_28 = arith.constant 0 : index
    %74 = vector.load %arg3[%c0_26, %c0_27, %c0_28] : memref<1x16x128xf32, #tpu.memory_space<vmem>>, vector<1x16x128xf32>
    %75 = vector.shape_cast %74 : vector<1x16x128xf32> to vector<16x128xf32>
    %76 = vector.shape_cast %73 : vector<16x128xf32> to vector<1x16x128xf32>
    tpu.vector_store %arg3[%c0_26, %c0_27, %c0_28], %76 {strides = array<i32>} : memref<1x16x128xf32, #tpu.memory_space<vmem>>, vector<1x16x128xf32>,
    return
  }
  func.func @transform_0(%arg0: i32) -> (i32, i32, i32) {
    %c0_i32 = arith.constant 0 : i32
    %c0_i32_0 = arith.constant 0 : i32
    %c0_i32_1 = arith.constant 0 : i32
    return %arg0, %c0_i32, %c0_i32_0 : i32, i32, i32
  }
  func.func @transform_1(%arg0: i32) -> (i32, i32) {
    %c0_i32 = arith.constant 0 : i32
    %c0_i32_0 = arith.constant 0 : i32
    %c0_i32_1 = arith.constant 0 : i32
    return %c0_i32, %c0_i32_0 : i32, i32
  }
  func.func @transform_2(%arg0: i32) -> (i32, i32, i32) {
    %c0_i32 = arith.constant 0 : i32
    %c0_i32_0 = arith.constant 0 : i32
    %c0_i32_1 = arith.constant 0 : i32
    return %arg0, %c0_i32, %c0_i32_0 : i32, i32, i32
  }
}

</mosaic_0001>

<llo_original>
// kernel: mpnn_lstm_forward.1
$region0: #{mpnn_lstm_forward.1}
  #allocation0 [shape = 'u32[]', space=smem, size = 0x4, offset = 0x4, fixed_abs, tag = 'smem constant byte address 0x4 - core index']
  #allocation1 [shape = 'u32[144,128]{1,0:T(1,128)}', space=vmem, size = 0x12000, scoped, tag = 'internal scratch']
  %s0 = inlined_call_operand.vmem [shape: f32[4,16,128], index: 0, kind: input, shape index: {}]
  %s1 = inlined_call_operand.vmem [shape: f32[320,128], index: 1, kind: input, shape index: {}]
  %s2 = inlined_call_operand.hbm [shape: f32[4,16,128], index: 2, kind: output, shape index: {}]
  %s3 = sld [smem:[#allocation0]]
  $region41: #{mpnn_lstm_forward.1} parent=0
    _
  %s5 = ssub.s32 1, %s3
  %s6 = scalar_select 0, %s5, %s3
  $region1: #{mpnn_lstm_forward.1} parent=0
    #allocation2 [shape = 'u8[16384]{0}', space=vmem, size = 0x4000, scoped, tag = 'output window, operand 0']
    #allocation3 [shape = 's32[2]{0}', space=sflag, size = 0x8, scoped, tag = 'scoped memory for mpnn_lstm_forward.1']
    %7 = vsyncpa [#allocation3], 0
    %s8 = scalar_lea.sflag [#allocation3], 1
    %9 = vsyncpa %s8, 0
    loop: start=0, step=1, limit=6
    $region2: #{mpnn_lstm_forward.1} parent=1 // loop_pre_header
      _
    $region3: #{mpnn_lstm_forward.1} parent=1 // loop_header
      %s11 = sphi 0, %s15
      %p12 = scmp.ge.s32.totalorder %s11, 6
      %s21 = sphi 0, %s23
      %s24 = sphi 0, %s21
      %s25 = sphi 0, %s24
      %s41 = sphi 0, %s25
      %s45 = sphi 0, %s45
      %s47 = sphi 0, %s45
      %s48 = sphi 0, %s47
      %s62 = sphi 0, %s48
      %s68 = sphi 0, %s70
      %s71 = sphi 0, %s68
      %s72 = sphi 0, %s71
      %s88 = sphi 0, %s72
    $region4: #{mpnn_lstm_forward.1} parent=1 // loop_header_branch
      %14 = sbr.rel (%p12) target = $region8
    $region5: #{mpnn_lstm_forward.1} parent=1 // loop_body
      %s16 = ssub.s32 %s11, 1
      %s17 = ssub.s32 %s11, 2
      %s18 = sadd.s32 %s11, 1
      %s19 = ssub.s32 %s11, %s18
      %p20 = scmp.eq.s32.totalorder %s19, 0
      %s22 = sadd.s32 %s21, 1
      %s23 = scalar_select %p20, %s21, %s22
      %p26 = pneg %p20
      %p27 = scmp.eq.s32.totalorder %s11, 3
      %p28 = por %p26, %p27
      %p29 = scmp.ne.s32.totalorder %s21, %s24
      %p30 = scmp.eq.s32.totalorder %s11, 0
      %p31 = por %p29, %p30
      %p32 = scmp.ne.s32.totalorder %s21, %s24
      %p33 = scmp.eq.s32.totalorder %s16, 3
      %p34 = por %p32, %p33
      %p35 = scmp.ne.s32.totalorder %s24, %s25
      %p36 = scmp.eq.s32.totalorder %s16, 0
      %p37 = por %p35, %p36
      %p38 = scmp.ne.s32.totalorder %s24, %s25
      %p39 = scmp.eq.s32.totalorder %s17, 3
      %p40 = por %p38, %p39
      %p42 = scmp.ne.s32.totalorder %s25, %s41
      %p43 = scmp.eq.s32.totalorder %s17, 0
      %p44 = por %p42, %p43
      %s46 = sadd.s32 %s45, 1
      %p49 = scmp.eq.s32.totalorder %s11, 3
      %p50 = scmp.ne.s32.totalorder %s45, %s47
      %p51 = scmp.eq.s32.totalorder %s11, 0
      %p52 = por %p50, %p51
      %p53 = scmp.ne.s32.totalorder %s45, %s47
      %p54 = scmp.eq.s32.totalorder %s16, 3
      %p55 = por %p53, %p54
      %p56 = scmp.ne.s32.totalorder %s47, %s48
      %p57 = scmp.eq.s32.totalorder %s16, 0
      %p58 = por %p56, %p57
      %p59 = scmp.ne.s32.totalorder %s47, %s48
      %p60 = scmp.eq.s32.totalorder %s17, 3
      %p61 = por %p59, %p60
      %p63 = scmp.ne.s32.totalorder %s48, %s62
      %p64 = scmp.eq.s32.totalorder %s17, 0
      %p65 = por %p63, %p64
      %s66 = ssub.s32 %s11, %s18
      %p67 = scmp.eq.s32.totalorder %s66, 0
      %s69 = sadd.s32 %s68, 1
      %s70 = scalar_select %p67, %s68, %s69
      %p73 = pneg %p67
      %p74 = scmp.eq.s32.totalorder %s11, 3
      %p75 = por %p73, %p74
      %p76 = scmp.ne.s32.totalorder %s68, %s71
      %p77 = scmp.eq.s32.totalorder %s11, 0
      %p78 = por %p76, %p77
      %p79 = scmp.ne.s32.totalorder %s68, %s71
      %p80 = scmp.eq.s32.totalorder %s16, 3
      %p81 = por %p79, %p80
      %p82 = scmp.ne.s32.totalorder %s71, %s72
      %p83 = scmp.eq.s32.totalorder %s16, 0
      %p84 = por %p82, %p83
      %p85 = scmp.ne.s32.totalorder %s71, %s72
      %p86 = scmp.eq.s32.totalorder %s17, 3
      %p87 = por %p85, %p86
      %p89 = scmp.ne.s32.totalorder %s72, %s88
      %p90 = scmp.eq.s32.totalorder %s17, 0
      %p91 = por %p89, %p90
      %p92 = scmp.le.s32.totalorder 1, %s11
      %p93 = scmp.lt.s32.totalorder %s11, 5
      %p94 = pnand %p92, %p93
      %p95 = pneg %p94
      // Predicated region
      $region9: #{mpnn_lstm_forward.1} parent=5 // pred_check
        _
      $region10: #{mpnn_lstm_forward.1} parent=5 // pred_check_branch
        %97 = sbr.rel (%p94) target = $region12
      $region11: #{mpnn_lstm_forward.1} parent=5 // pred_region
        %s98 = ssub.s32 %s11, 1
        // Predicated region
        $region13: #{mpnn_lstm_forward.1} parent=11 // pred_check
          %p99 = pneg %p58
        $region14: #{mpnn_lstm_forward.1} parent=11 // pred_check_branch
          %101 = sbr.rel (%p99) target = $region16
        $region15: #{mpnn_lstm_forward.1} parent=11 // pred_region
          _
        $region16: #{mpnn_lstm_forward.1} parent=11 // pred_fallthru
          _
      $region12: #{mpnn_lstm_forward.1} parent=5 // pred_fallthru
        _
      %p102 = scmp.lt.s32.totalorder %s11, 4
      // Predicated region
      $region17: #{mpnn_lstm_forward.1} parent=5 // pred_check
        %p103 = pneg %p102
      $region18: #{mpnn_lstm_forward.1} parent=5 // pred_check_branch
        %105 = sbr.rel (%p103) target = $region20
      $region19: #{mpnn_lstm_forward.1} parent=5 // pred_region
        // Predicated region
        $region21: #{mpnn_lstm_forward.1} parent=19 // pred_check
          %p106 = pneg %p31
        $region22: #{mpnn_lstm_forward.1} parent=19 // pred_check_branch
          %108 = sbr.rel (%p106) target = $region24
        $region23: #{mpnn_lstm_forward.1} parent=19 // pred_region
          %p109 = scmp.lt.s32.totalorder %s11, 3
          %s110 = scalar_select %p109, %s11, 3
          %s111 = smul.addr %s110, 2
          %s112 = smul.addr %s111, 8
          %s113 = scalar_lea.vmem %s0, %s112
        $region24: #{mpnn_lstm_forward.1} parent=19 // pred_fallthru
          _
      $region20: #{mpnn_lstm_forward.1} parent=5 // pred_fallthru
        _
      %p114 = scmp.le.s32.totalorder 1, %s11
      %p115 = scmp.lt.s32.totalorder %s11, 5
      %p116 = pnand %p114, %p115
      %p117 = pneg %p116
      // Predicated region
      $region25: #{mpnn_lstm_forward.1} parent=5 // pred_check
        _
      $region26: #{mpnn_lstm_forward.1} parent=5 // pred_check_branch
        %119 = sbr.rel (%p116) target = $region28
      $region27: #{mpnn_lstm_forward.1} parent=5 // pred_region
        %s120 = ssub.s32 %s11, 1
        %p121 = scmp.lt.s32.totalorder %s16, 3
        %s122 = scalar_select %p121, %s16, 3
        %s123 = smul.addr %s122, 2
        %s124 = smul.addr %s123, 8
        %s125 = scalar_lea.vmem %s0, %s124
        %p126 = pneg %p37
        %p127 = pneg %p34
        %p128 = pneg %p58
        %p129 = pneg %p55
        %p130 = pneg %p84
        %p131 = pneg %p81
        %s132 = sand.u32 %s71, 1
        %s133 = scalar_lea.sflag [#allocation3], %s132
        %s134 = sand.u32 %s71, 1
        %s135 = smul.addr %s134, 16
        %s136 = scalar_lea.vmem [#allocation2], %s135
        %p137 = scmp.lt.s32.totalorder %s16, 3
        %s138 = scalar_select %p137, %s16, 3
        %s139 = smul.addr %s138, 2
        %s140 = smul.addr %s139, 8
        %s141 = scalar_lea.vmem %s0, %s140
        %v142 = vld [vmem:[%s141] sm:$0xff]
        %v143 = vld [vmem:[%s141 + $0x8] sm:$0xff]
        %v144 = vld [vmem:[%s1] sm:$0xff]
        %v145 = vld [vmem:[%s1 + $0x8] sm:$0xff]
        %v146 = vld [vmem:[%s1 + $0x10] sm:$0xff]
        %v147 = vld [vmem:[%s1 + $0x18] sm:$0xff]
        %v148 = vld [vmem:[%s1 + $0x20] sm:$0xff]
        %v149 = vld [vmem:[%s1 + $0x28] sm:$0xff]
        %v150 = vld [vmem:[%s1 + $0x30] sm:$0xff]
        %v151 = vld [vmem:[%s1 + $0x38] sm:$0xff]
        %v152 = vld [vmem:[%s1 + $0x40] sm:$0xff]
        %v153 = vld [vmem:[%s1 + $0x48] sm:$0xff]
        %v154 = vld [vmem:[%s1 + $0x50] sm:$0xff]
        %v155 = vld [vmem:[%s1 + $0x58] sm:$0xff]
        %v156 = vld [vmem:[%s1 + $0x60] sm:$0xff]
        %v157 = vld [vmem:[%s1 + $0x68] sm:$0xff]
        %v158 = vld [vmem:[%s1 + $0x70] sm:$0xff]
        %v159 = vld [vmem:[%s1 + $0x78] sm:$0xff]
        %v160 = vld [vmem:[%s1 + $0x80] sm:$0xff]
        %v161 = vld [vmem:[%s1 + $0x88] sm:$0xff]
        %v162 = vld [vmem:[%s1 + $0x90] sm:$0xff]
        %v163 = vld [vmem:[%s1 + $0x98] sm:$0xff]
        %v164 = vld [vmem:[%s1 + $0xa0] sm:$0xff]
        %v165 = vld [vmem:[%s1 + $0xa8] sm:$0xff]
        %v166 = vld [vmem:[%s1 + $0xb0] sm:$0xff]
        %v167 = vld [vmem:[%s1 + $0xb8] sm:$0xff]
        %v168 = vld [vmem:[%s1 + $0xc0] sm:$0xff]
        %v169 = vld [vmem:[%s1 + $0xc8] sm:$0xff]
        %v170 = vld [vmem:[%s1 + $0xd0] sm:$0xff]
        %v171 = vld [vmem:[%s1 + $0xd8] sm:$0xff]
        %v172 = vld [vmem:[%s1 + $0xe0] sm:$0xff]
        %v173 = vld [vmem:[%s1 + $0xe8] sm:$0xff]
        %v174 = vld [vmem:[%s1 + $0xf0] sm:$0xff]
        %v175 = vld [vmem:[%s1 + $0xf8] sm:$0xff]
        %v176 = vld [vmem:[%s1 + $0x100] sm:$0xff]
        %v177 = vld [vmem:[%s1 + $0x108] sm:$0xff]
        %v178 = vld [vmem:[%s1 + $0x110] sm:$0xff]
        %v179 = vld [vmem:[%s1 + $0x118] sm:$0xff]
        %v180 = vld [vmem:[%s1 + $0x120] sm:$0xff]
        %v181 = vld [vmem:[%s1 + $0x128] sm:$0xff]
        %v182 = vld [vmem:[%s1 + $0x130] sm:$0xff]
        %v183 = vld [vmem:[%s1 + $0x138] sm:$0xff]
        %184 = vmatprep.subr.mxu0 0.0
        %185 = vmatpush1.msra.mxu0 %v156
        %186 = vmatprep.subr.mxu0 0.0
        %187 = vmatpush1.msra.mxu0 %v157
        %188 = vmatprep.subr.mxu0 0.0
        %189 = vmatpush1.msra.mxu0 %v158
        %190 = vmatprep.subr.mxu0 0.0
        %191 = vmatpush1.msra.mxu0 %v159
        %192 = vmatprep.subr.mxu0 0.0
        %193 = vmatpush1.msra.mxu0 %v160
        %194 = vmatprep.subr.mxu0 0.0
        %195 = vmatpush1.msra.mxu0 %v161
        %196 = vmatprep.subr.mxu0 0.0
        %197 = vmatpush1.msra.mxu0 %v162
        %198 = vmatprep.subr.mxu0 0.0
        %199 = vmatpush1.msra.mxu0 %v163
        %200 = vmatprep.subr.mxu0 0.0
        %201 = vmatpush1.msra.mxu0 %v164
        %202 = vmatprep.subr.mxu0 0.0
        %203 = vmatpush1.msra.mxu0 %v165
        %204 = vmatprep.subr.mxu0 0.0
        %205 = vmatpush1.msra.mxu0 %v166
        %206 = vmatprep.subr.mxu0 0.0
        %207 = vmatpush1.msra.mxu0 %v167
        %208 = vmatprep.subr.mxu0 0.0
        %209 = vmatpush1.msra.mxu0 %v168
        %210 = vmatprep.subr.mxu0 0.0
        %211 = vmatpush1.msra.mxu0 %v169
        %212 = vmatprep.subr.mxu0 0.0
        %213 = vmatpush1.msra.mxu0 %v170
        %214 = vmatprep.subr.mxu0 0.0
        %215 = vmatpush1.msra.mxu0 %v171
        %216 = vmatprep.subr.mxu0 0.0
        %217 = vmatpush1.msra.mxu0 0.0
        %218 = vmatprep.subr.mxu0 0.0
        %219 = vmatpush1.msra.mxu0 0.0
        %220 = vmatprep.subr.mxu0 0.0
        %221 = vmatpush1.msra.mxu0 0.0
        %222 = vmatprep.subr.mxu0 0.0
        %223 = vmatpush1.msra.mxu0 0.0
        %224 = vmatprep.subr.mxu0 0.0
        %225 = vmatpush1.msra.mxu0 0.0
        %226 = vmatprep.subr.mxu0 0.0
        %227 = vmatpush1.msra.mxu0 0.0
        %228 = vmatprep.subr.mxu0 0.0
        %229 = vmatpush1.msra.mxu0 0.0
        %230 = vmatprep.subr.mxu0 0.0
        %231 = vmatpush1.msra.mxu0 0.0
        %232 = vmatprep.subr.mxu0 0.0
        %233 = vmatpush1.msra.mxu0 0.0
        %234 = vmatprep.subr.mxu0 0.0
        %235 = vmatpush1.msra.mxu0 0.0
        %236 = vmatprep.subr.mxu0 0.0
        %237 = vmatpush1.msra.mxu0 0.0
        %238 = vmatprep.subr.mxu0 0.0
        %239 = vmatpush1.msra.mxu0 0.0
        %240 = vmatprep.subr.mxu0 0.0
        %241 = vmatpush1.msra.mxu0 0.0
        %242 = vmatprep.subr.mxu0 0.0
        %243 = vmatpush1.msra.mxu0 0.0
        %244 = vmatprep.subr.mxu0 0.0
        %245 = vmatpush1.msra.mxu0 0.0
        %246 = vmatprep.subr.mxu0 0.0
        %247 = vmatpush1.msra.mxu0 0.0
        %248 = vmatprep.mubr.f32.mxu0 0.0
        %249 = vmatmul.mubr.f32.gmra.mrb[0].mxu0 %v142
        %v250 = vpop.f32.mrb[0].mxu0
        %v251 = vadd.f32 0.0, %v250
        %v252 = vpop.f32.mrb[0].mxu0
        %253 = vmatprep.mubr.f32.mxu0 0.0
        %254 = vmatmul.mubr.f32.gmra.mrb[0].mxu0 %v143
        %v255 = vpop.f32.mrb[0].mxu0
        %v256 = vadd.f32 0.0, %v255
        %v257 = vpop.f32.mrb[0].mxu0
        %258 = vdwg.mxu0
        %vm259 = vcmask 130048
        %v261 = vsel %vm259, %v142, 0
        %v264 = vsel %vm259, %v143, 0
        %266 = vmatprep.subr.mxu0 0.0
        %267 = vmatpush1.msra.mxu0 %v251
        %268 = vmatprep.subr.mxu0 0.0
        %269 = vmatpush1.msra.mxu0 %v256
        %270 = vmatprep.subr.mxu0 0.0
        %271 = vmatpush1.msra.mxu0 0.0
        %272 = vmatprep.subr.mxu0 0.0
        %273 = vmatpush1.msra.mxu0 0.0
        %274 = vmatprep.subr.mxu0 0.0
        %275 = vmatpush1.msra.mxu0 0.0
        %276 = vmatprep.subr.mxu0 0.0
        %277 = vmatpush1.msra.mxu0 0.0
        %278 = vmatprep.subr.mxu0 0.0
        %279 = vmatpush1.msra.mxu0 0.0
        %280 = vmatprep.subr.mxu0 0.0
        %281 = vmatpush1.msra.mxu0 0.0
        %282 = vmatprep.subr.mxu0 0.0
        %283 = vmatpush1.msra.mxu0 0.0
        %284 = vmatprep.subr.mxu0 0.0
        %285 = vmatpush1.msra.mxu0 0.0
        %286 = vmatprep.subr.mxu0 0.0
        %287 = vmatpush1.msra.mxu0 0.0
        %288 = vmatprep.subr.mxu0 0.0
        %289 = vmatpush1.msra.mxu0 0.0
        %290 = vmatprep.subr.mxu0 0.0
        %291 = vmatpush1.msra.mxu0 0.0
        %292 = vmatprep.subr.mxu0 0.0
        %293 = vmatpush1.msra.mxu0 0.0
        %294 = vmatprep.subr.mxu0 0.0
        %295 = vmatpush1.msra.mxu0 0.0
        %296 = vmatprep.subr.mxu0 0.0
        %297 = vmatpush1.msra.mxu0 0.0
        %298 = vmatprep.subr.mxu0 0.0
        %299 = vmatpush1.msra.mxu0 0.0
        %300 = vmatprep.subr.mxu0 0.0
        %301 = vmatpush1.msra.mxu0 0.0
        %302 = vmatprep.subr.mxu0 0.0
        %303 = vmatpush1.msra.mxu0 0.0
        %304 = vmatprep.subr.mxu0 0.0
        %305 = vmatpush1.msra.mxu0 0.0
        %306 = vmatprep.subr.mxu0 0.0
        %307 = vmatpush1.msra.mxu0 0.0
        %308 = vmatprep.subr.mxu0 0.0
        %309 = vmatpush1.msra.mxu0 0.0
        %310 = vmatprep.subr.mxu0 0.0
        %311 = vmatpush1.msra.mxu0 0.0
        %312 = vmatprep.subr.mxu0 0.0
        %313 = vmatpush1.msra.mxu0 0.0
        %314 = vmatprep.subr.mxu0 0.0
        %315 = vmatpush1.msra.mxu0 0.0
        %316 = vmatprep.subr.mxu0 0.0
        %317 = vmatpush1.msra.mxu0 0.0
        %318 = vmatprep.subr.mxu0 0.0
        %319 = vmatpush1.msra.mxu0 0.0
        %320 = vmatprep.subr.mxu0 0.0
        %321 = vmatpush1.msra.mxu0 0.0
        %322 = vmatprep.subr.mxu0 0.0
        %323 = vmatpush1.msra.mxu0 0.0
        %324 = vmatprep.subr.mxu0 0.0
        %325 = vmatpush1.msra.mxu0 0.0
        %326 = vmatprep.subr.mxu0 0.0
        %327 = vmatpush1.msra.mxu0 0.0
        %328 = vmatprep.subr.mxu0 0.0
        %329 = vmatpush1.msra.mxu0 0.0
        %330 = vmatprep.mubr.f32.mxu0 0.0
        %331 = vmatmul.mubr.f32.gmra.mrb[0].mxu0 %v261
        %v332 = vpop.f32.mrb[0].mxu0
        %v333 = vadd.f32 %v172, %v332
        %v334 = vpop.f32.mrb[0].mxu0
        %335 = vmatprep.mubr.f32.mxu0 0.0
        %336 = vmatmul.mubr.f32.gmra.mrb[0].mxu0 %v264
        %v337 = vpop.f32.mrb[0].mxu0
        %v338 = vadd.f32 %v173, %v337
        %v339 = vpop.f32.mrb[0].mxu0
        %340 = vdwg.mxu0
        %v341 = vmax.f32 %v333, 0.0
        %v342 = vmax.f32 %v338, 0.0
        %v343 = vmul.f32 %v341, %v174
        %v344 = vmul.f32 %v342, %v175
        %v345 = vadd.f32 %v343, %v176
        %v346 = vadd.f32 %v344, %v177
        %vm347 = vcmask 261120
        %v349 = vsel %vm347, %v345, 0
        %v352 = vsel %vm347, %v346, 0
        %354 = vmatprep.subr.mxu0 0.0
        %355 = vmatpush1.msra.mxu0 %v144
        %356 = vmatprep.subr.mxu0 0.0
        %357 = vmatpush1.msra.mxu0 %v145
        %358 = vmatprep.subr.mxu0 0.0
        %359 = vmatpush1.msra.mxu0 %v146
        %360 = vmatprep.subr.mxu0 0.0
        %361 = vmatpush1.msra.mxu0 %v147
        %362 = vmatprep.subr.mxu0 0.0
        %363 = vmatpush1.msra.mxu0 0.0
        %364 = vmatprep.subr.mxu0 0.0
        %365 = vmatpush1.msra.mxu0 0.0
        %366 = vmatprep.subr.mxu0 0.0
        %367 = vmatpush1.msra.mxu0 0.0
        %368 = vmatprep.subr.mxu0 0.0
        %369 = vmatpush1.msra.mxu0 0.0
        %370 = vmatprep.subr.mxu0 0.0
        %371 = vmatpush1.msra.mxu0 0.0
        %372 = vmatprep.subr.mxu0 0.0
        %373 = vmatpush1.msra.mxu0 0.0
        %374 = vmatprep.subr.mxu0 0.0
        %375 = vmatpush1.msra.mxu0 0.0
        %376 = vmatprep.subr.mxu0 0.0
        %377 = vmatpush1.msra.mxu0 0.0
        %378 = vmatprep.subr.mxu0 0.0
        %379 = vmatpush1.msra.mxu0 0.0
        %380 = vmatprep.subr.mxu0 0.0
        %381 = vmatpush1.msra.mxu0 0.0
        %382 = vmatprep.subr.mxu0 0.0
        %383 = vmatpush1.msra.mxu0 0.0
        %384 = vmatprep.subr.mxu0 0.0
        %385 = vmatpush1.msra.mxu0 0.0
        %386 = vmatprep.subr.mxu0 0.0
        %387 = vmatpush1.msra.mxu0 0.0
        %388 = vmatprep.subr.mxu0 0.0
        %389 = vmatpush1.msra.mxu0 0.0
        %390 = vmatprep.subr.mxu0 0.0
        %391 = vmatpush1.msra.mxu0 0.0
        %392 = vmatprep.subr.mxu0 0.0
        %393 = vmatpush1.msra.mxu0 0.0
        %394 = vmatprep.subr.mxu0 0.0
        %395 = vmatpush1.msra.mxu0 0.0
        %396 = vmatprep.subr.mxu0 0.0
        %397 = vmatpush1.msra.mxu0 0.0
        %398 = vmatprep.subr.mxu0 0.0
        %399 = vmatpush1.msra.mxu0 0.0
        %400 = vmatprep.subr.mxu0 0.0
        %401 = vmatpush1.msra.mxu0 0.0
        %402 = vmatprep.subr.mxu0 0.0
        %403 = vmatpush1.msra.mxu0 0.0
        %404 = vmatprep.subr.mxu0 0.0
        %405 = vmatpush1.msra.mxu0 0.0
        %406 = vmatprep.subr.mxu0 0.0
        %407 = vmatpush1.msra.mxu0 0.0
        %408 = vmatprep.subr.mxu0 0.0
        %409 = vmatpush1.msra.mxu0 0.0
        %410 = vmatprep.subr.mxu0 0.0
        %411 = vmatpush1.msra.mxu0 0.0
        %412 = vmatprep.subr.mxu0 0.0
        %413 = vmatpush1.msra.mxu0 0.0
        %414 = vmatprep.subr.mxu0 0.0
        %415 = vmatpush1.msra.mxu0 0.0
        %416 = vmatprep.subr.mxu0 0.0
        %417 = vmatpush1.msra.mxu0 0.0
        %418 = vmatprep.mubr.f32.mxu0 0.0
        %419 = vmatmul.mubr.f32.gmra.mrb[0].mxu0 %v349
        %v420 = vpop.f32.mrb[0].mxu0
        %v421 = vadd.f32 0.0, %v420
        %v422 = vpop.f32.mrb[0].mxu0
        %423 = vmatprep.mubr.f32.mxu0 0.0
        %424 = vmatmul.mubr.f32.gmra.mrb[0].mxu0 %v352
        %v425 = vpop.f32.mrb[0].mxu0
        %v426 = vadd.f32 0.0, %v425
        %v427 = vpop.f32.mrb[0].mxu0
        %428 = vdwg.mxu0
        %429 = vmatprep.subr.mxu0 0.0
        %430 = vmatpush1.msra.mxu0 %v421
        %431 = vmatprep.subr.mxu0 0.0
        %432 = vmatpush1.msra.mxu0 %v426
        %433 = vmatprep.subr.mxu0 0.0
        %434 = vmatpush1.msra.mxu0 0.0
        %435 = vmatprep.subr.mxu0 0.0
        %436 = vmatpush1.msra.mxu0 0.0
        %437 = vmatprep.subr.mxu0 0.0
        %438 = vmatpush1.msra.mxu0 0.0
        %439 = vmatprep.subr.mxu0 0.0
        %440 = vmatpush1.msra.mxu0 0.0
        %441 = vmatprep.subr.mxu0 0.0
        %442 = vmatpush1.msra.mxu0 0.0
        %443 = vmatprep.subr.mxu0 0.0
        %444 = vmatpush1.msra.mxu0 0.0
        %445 = vmatprep.subr.mxu0 0.0
        %446 = vmatpush1.msra.mxu0 0.0
        %447 = vmatprep.subr.mxu0 0.0
        %448 = vmatpush1.msra.mxu0 0.0
        %449 = vmatprep.subr.mxu0 0.0
        %450 = vmatpush1.msra.mxu0 0.0
        %451 = vmatprep.subr.mxu0 0.0
        %452 = vmatpush1.msra.mxu0 0.0
        %453 = vmatprep.subr.mxu0 0.0
        %454 = vmatpush1.msra.mxu0 0.0
        %455 = vmatprep.subr.mxu0 0.0
        %456 = vmatpush1.msra.mxu0 0.0
        %457 = vmatprep.subr.mxu0 0.0
        %458 = vmatpush1.msra.mxu0 0.0
        %459 = vmatprep.subr.mxu0 0.0
        %460 = vmatpush1.msra.mxu0 0.0
        %461 = vmatprep.subr.mxu0 0.0
        %462 = vmatpush1.msra.mxu0 0.0
        %463 = vmatprep.subr.mxu0 0.0
        %464 = vmatpush1.msra.mxu0 0.0
        %465 = vmatprep.subr.mxu0 0.0
        %466 = vmatpush1.msra.mxu0 0.0
        %467 = vmatprep.subr.mxu0 0.0
        %468 = vmatpush1.msra.mxu0 0.0
        %469 = vmatprep.subr.mxu0 0.0
        %470 = vmatpush1.msra.mxu0 0.0
        %471 = vmatprep.subr.mxu0 0.0
        %472 = vmatpush1.msra.mxu0 0.0
        %473 = vmatprep.subr.mxu0 0.0
        %474 = vmatpush1.msra.mxu0 0.0
        %475 = vmatprep.subr.mxu0 0.0
        %476 = vmatpush1.msra.mxu0 0.0
        %477 = vmatprep.subr.mxu0 0.0
        %478 = vmatpush1.msra.mxu0 0.0
        %479 = vmatprep.subr.mxu0 0.0
        %480 = vmatpush1.msra.mxu0 0.0
        %481 = vmatprep.subr.mxu0 0.0
        %482 = vmatpush1.msra.mxu0 0.0
        %483 = vmatprep.subr.mxu0 0.0
        %484 = vmatpush1.msra.mxu0 0.0
        %485 = vmatprep.subr.mxu0 0.0
        %486 = vmatpush1.msra.mxu0 0.0
        %487 = vmatprep.subr.mxu0 0.0
        %488 = vmatpush1.msra.mxu0 0.0
        %489 = vmatprep.subr.mxu0 0.0
        %490 = vmatpush1.msra.mxu0 0.0
        %491 = vmatprep.subr.mxu0 0.0
        %492 = vmatpush1.msra.mxu0 0.0
        %493 = vmatprep.mubr.f32.mxu0 0.0
        %494 = vmatmul.mubr.f32.gmra.mrb[0].mxu0 %v261
        %v495 = vpop.f32.mrb[0].mxu0
        %v496 = vadd.f32 %v178, %v495
        %v497 = vpop.f32.mrb[0].mxu0
        %498 = vmatprep.mubr.f32.mxu0 0.0
        %499 = vmatmul.mubr.f32.gmra.mrb[0].mxu0 %v264
        %v500 = vpop.f32.mrb[0].mxu0
        %v501 = vadd.f32 %v179, %v500
        %v502 = vpop.f32.mrb[0].mxu0
        %503 = vdwg.mxu0
        %v504 = vmax.f32 %v496, 0.0
        %v505 = vmax.f32 %v501, 0.0
        %v507 = vsel %vm347, %v504, 0
        %v510 = vsel %vm347, %v505, 0
        %512 = vmatprep.subr.mxu0 0.0
        %513 = vmatpush1.msra.mxu0 %v148
        %514 = vmatprep.subr.mxu0 0.0
        %515 = vmatpush1.msra.mxu0 %v149
        %516 = vmatprep.subr.mxu0 0.0
        %517 = vmatpush1.msra.mxu0 %v150
        %518 = vmatprep.subr.mxu0 0.0
        %519 = vmatpush1.msra.mxu0 %v151
        %520 = vmatprep.subr.mxu0 0.0
        %521 = vmatpush1.msra.mxu0 0.0
        %522 = vmatprep.subr.mxu0 0.0
        %523 = vmatpush1.msra.mxu0 0.0
        %524 = vmatprep.subr.mxu0 0.0
        %525 = vmatpush1.msra.mxu0 0.0
        %526 = vmatprep.subr.mxu0 0.0
        %527 = vmatpush1.msra.mxu0 0.0
        %528 = vmatprep.subr.mxu0 0.0
        %529 = vmatpush1.msra.mxu0 0.0
        %530 = vmatprep.subr.mxu0 0.0
        %531 = vmatpush1.msra.mxu0 0.0
        %532 = vmatprep.subr.mxu0 0.0
        %533 = vmatpush1.msra.mxu0 0.0
        %534 = vmatprep.subr.mxu0 0.0
        %535 = vmatpush1.msra.mxu0 0.0
        %536 = vmatprep.subr.mxu0 0.0
        %537 = vmatpush1.msra.mxu0 0.0
        %538 = vmatprep.subr.mxu0 0.0
        %539 = vmatpush1.msra.mxu0 0.0
        %540 = vmatprep.subr.mxu0 0.0
        %541 = vmatpush1.msra.mxu0 0.0
        %542 = vmatprep.subr.mxu0 0.0
        %543 = vmatpush1.msra.mxu0 0.0
        %544 = vmatprep.subr.mxu0 0.0
        %545 = vmatpush1.msra.mxu0 0.0
        %546 = vmatprep.subr.mxu0 0.0
        %547 = vmatpush1.msra.mxu0 0.0
        %548 = vmatprep.subr.mxu0 0.0
        %549 = vmatpush1.msra.mxu0 0.0
        %550 = vmatprep.subr.mxu0 0.0
        %551 = vmatpush1.msra.mxu0 0.0
        %552 = vmatprep.subr.mxu0 0.0
        %553 = vmatpush1.msra.mxu0 0.0
        %554 = vmatprep.subr.mxu0 0.0
        %555 = vmatpush1.msra.mxu0 0.0
        %556 = vmatprep.subr.mxu0 0.0
        %557 = vmatpush1.msra.mxu0 0.0
        %558 = vmatprep.subr.mxu0 0.0
        %559 = vmatpush1.msra.mxu0 0.0
        %560 = vmatprep.subr.mxu0 0.0
        %561 = vmatpush1.msra.mxu0 0.0
        %562 = vmatprep.subr.mxu0 0.0
        %563 = vmatpush1.msra.mxu0 0.0
        %564 = vmatprep.subr.mxu0 0.0
        %565 = vmatpush1.msra.mxu0 0.0
        %566 = vmatprep.subr.mxu0 0.0
        %567 = vmatpush1.msra.mxu0 0.0
        %568 = vmatprep.subr.mxu0 0.0
        %569 = vmatpush1.msra.mxu0 0.0
        %570 = vmatprep.subr.mxu0 0.0
        %571 = vmatpush1.msra.mxu0 0.0
        %572 = vmatprep.subr.mxu0 0.0
        %573 = vmatpush1.msra.mxu0 0.0
        %574 = vmatprep.subr.mxu0 0.0
        %575 = vmatpush1.msra.mxu0 0.0
        %576 = vmatprep.mubr.f32.mxu0 0.0
        %577 = vmatmul.mubr.f32.gmra.mrb[0].mxu0 %v507
        %v578 = vpop.f32.mrb[0].mxu0
        %v579 = vadd.f32 0.0, %v578
        %v580 = vpop.f32.mrb[0].mxu0
        %581 = vmatprep.mubr.f32.mxu0 0.0
        %582 = vmatmul.mubr.f32.gmra.mrb[0].mxu0 %v510
        %v583 = vpop.f32.mrb[0].mxu0
        %v584 = vadd.f32 0.0, %v583
        %v585 = vpop.f32.mrb[0].mxu0
        %586 = vdwg.mxu0
        %589 = vrot.lane.b32.xlu0 %v579, 32
        %v590 = vpop.permute.xlu0 %589
        %591 = vrot.lane.b32.xlu0 %v584, 32
        %v592 = vpop.permute.xlu0 %591
        %v595 = vadd.f32 %v421, %v590
        %v596 = vadd.f32 %v426, %v592
        %599 = vrot.lane.b32.xlu0 %v180, 32
        %v600 = vpop.permute.xlu0 %599
        %601 = vrot.lane.b32.xlu0 %v181, 32
        %v602 = vpop.permute.xlu0 %601
        %v605 = vadd.f32 %v595, %v600
        %v606 = vadd.f32 %v596, %v602
        %v607 = vxor.u32 %v605, 2147483648
        %v608 = vxor.u32 %v606, 2147483648
        %v609 = vmul.f32 %v607, 1.442695
        %v610 = vpow.pop %v609
        %v611 = vmul.f32 %v608, 1.442695
        %v612 = vpow.pop %v611
        %v613 = vadd.f32 %v610, 1.0
        %v614 = vadd.f32 %v612, 1.0
        %v615 = vrcp.pop %v613
        %v616 = vmul.f32 1.0, %v615
        %v617 = vrcp.pop %v614
        %v618 = vmul.f32 1.0, %v617
        %v619 = vtanh.pop %v605
        %v620 = vtanh.pop %v606
        %623 = vrot.lane.b32.xlu0 %v619, 96
        %v624 = vpop.permute.xlu0 %623
        %625 = vrot.lane.b32.xlu0 %v620, 96
        %v626 = vpop.permute.xlu0 %625
        %v629 = vmul.f32 %v616, %v624
        %v630 = vmul.f32 %v618, %v626
        %v631 = vtanh.pop %v629
        %v632 = vtanh.pop %v630
        %635 = vrot.lane.b32.xlu0 %v631, 64
        %v636 = vpop.permute.xlu0 %635
        %637 = vrot.lane.b32.xlu0 %v632, 64
        %v638 = vpop.permute.xlu0 %637
        %v641 = vmul.f32 %v616, %v636
        %v642 = vmul.f32 %v618, %v638
        %645 = vrot.lane.b32.xlu0 %v641, 32
        %v646 = vpop.permute.xlu0 %645
        %647 = vrot.lane.b32.xlu0 %v642, 32
        %v648 = vpop.permute.xlu0 %647
        %v649 = vsel %vm347, %v646, 0
        %v651 = vsel %vm347, %v648, 0
        %653 = vmatprep.subr.mxu0 0.0
        %654 = vmatpush1.msra.mxu0 %v152
        %655 = vmatprep.subr.mxu0 0.0
        %656 = vmatpush1.msra.mxu0 %v153
        %657 = vmatprep.subr.mxu0 0.0
        %658 = vmatpush1.msra.mxu0 %v154
        %659 = vmatprep.subr.mxu0 0.0
        %660 = vmatpush1.msra.mxu0 %v155
        %661 = vmatprep.subr.mxu0 0.0
        %662 = vmatpush1.msra.mxu0 0.0
        %663 = vmatprep.subr.mxu0 0.0
        %664 = vmatpush1.msra.mxu0 0.0
        %665 = vmatprep.subr.mxu0 0.0
        %666 = vmatpush1.msra.mxu0 0.0
        %667 = vmatprep.subr.mxu0 0.0
        %668 = vmatpush1.msra.mxu0 0.0
        %669 = vmatprep.subr.mxu0 0.0
        %670 = vmatpush1.msra.mxu0 0.0
        %671 = vmatprep.subr.mxu0 0.0
        %672 = vmatpush1.msra.mxu0 0.0
        %673 = vmatprep.subr.mxu0 0.0
        %674 = vmatpush1.msra.mxu0 0.0
        %675 = vmatprep.subr.mxu0 0.0
        %676 = vmatpush1.msra.mxu0 0.0
        %677 = vmatprep.subr.mxu0 0.0
        %678 = vmatpush1.msra.mxu0 0.0
        %679 = vmatprep.subr.mxu0 0.0
        %680 = vmatpush1.msra.mxu0 0.0
        %681 = vmatprep.subr.mxu0 0.0
        %682 = vmatpush1.msra.mxu0 0.0
        %683 = vmatprep.subr.mxu0 0.0
        %684 = vmatpush1.msra.mxu0 0.0
        %685 = vmatprep.subr.mxu0 0.0
        %686 = vmatpush1.msra.mxu0 0.0
        %687 = vmatprep.subr.mxu0 0.0
        %688 = vmatpush1.msra.mxu0 0.0
        %689 = vmatprep.subr.mxu0 0.0
        %690 = vmatpush1.msra.mxu0 0.0
        %691 = vmatprep.subr.mxu0 0.0
        %692 = vmatpush1.msra.mxu0 0.0
        %693 = vmatprep.subr.mxu0 0.0
        %694 = vmatpush1.msra.mxu0 0.0
        %695 = vmatprep.subr.mxu0 0.0
        %696 = vmatpush1.msra.mxu0 0.0
        %697 = vmatprep.subr.mxu0 0.0
        %698 = vmatpush1.msra.mxu0 0.0
        %699 = vmatprep.subr.mxu0 0.0
        %700 = vmatpush1.msra.mxu0 0.0
        %701 = vmatprep.subr.mxu0 0.0
        %702 = vmatpush1.msra.mxu0 0.0
        %703 = vmatprep.subr.mxu0 0.0
        %704 = vmatpush1.msra.mxu0 0.0
        %705 = vmatprep.subr.mxu0 0.0
        %706 = vmatpush1.msra.mxu0 0.0
        %707 = vmatprep.subr.mxu0 0.0
        %708 = vmatpush1.msra.mxu0 0.0
        %709 = vmatprep.subr.mxu0 0.0
        %710 = vmatpush1.msra.mxu0 0.0
        %711 = vmatprep.subr.mxu0 0.0
        %712 = vmatpush1.msra.mxu0 0.0
        %713 = vmatprep.subr.mxu0 0.0
        %714 = vmatpush1.msra.mxu0 0.0
        %715 = vmatprep.subr.mxu0 0.0
        %716 = vmatpush1.msra.mxu0 0.0
        %717 = vmatprep.mubr.f32.mxu0 0.0
        %718 = vmatmul.mubr.f32.gmra.mrb[0].mxu0 %v649
        %v719 = vpop.f32.mrb[0].mxu0
        %v720 = vadd.f32 %v182, %v719
        %v721 = vpop.f32.mrb[0].mxu0
        %722 = vmatprep.mubr.f32.mxu0 0.0
        %723 = vmatmul.mubr.f32.gmra.mrb[0].mxu0 %v651
        %v724 = vpop.f32.mrb[0].mxu0
        %v725 = vadd.f32 %v183, %v724
        %v726 = vpop.f32.mrb[0].mxu0
        %727 = vdwg.mxu0
        %v728 = vxor.u32 %v720, 2147483648
        %v729 = vxor.u32 %v725, 2147483648
        %v730 = vmul.f32 %v728, 1.442695
        %v731 = vpow.pop %v730
        %v732 = vmul.f32 %v729, 1.442695
        %v733 = vpow.pop %v732
        %v734 = vadd.f32 %v731, 1.0
        %v735 = vadd.f32 %v733, 1.0
        %v736 = vrcp.pop %v734
        %v737 = vmul.f32 1.0, %v736
        %v738 = vrcp.pop %v735
        %v739 = vmul.f32 1.0, %v738
        %v740 = vtanh.pop %v720
        %v741 = vtanh.pop %v725
        %744 = vrot.lane.b32.xlu0 %v740, 96
        %v745 = vpop.permute.xlu0 %744
        %746 = vrot.lane.b32.xlu0 %v741, 96
        %v747 = vpop.permute.xlu0 %746
        %v750 = vmul.f32 %v737, %v745
        %v751 = vmul.f32 %v739, %v747
        %v752 = vtanh.pop %v750
        %v753 = vtanh.pop %v751
        %756 = vrot.lane.b32.xlu0 %v752, 64
        %v757 = vpop.permute.xlu0 %756
        %758 = vrot.lane.b32.xlu0 %v753, 64
        %v759 = vpop.permute.xlu0 %758
        %v762 = vmul.f32 %v737, %v757
        %v763 = vmul.f32 %v739, %v759
        %v764 = vlaneseq
        %v765 = vand.u32 %v764, 127
        %vm766 = vcmp.ge.s32.totalorder %v765, 64
        %v767 = vsel %vm766, %v142, 0.0
        %v768 = vsel %vm766, %v143, 0.0
        %773 = vrot.lane.b32.xlu0 %v762, 96
        %v774 = vpop.permute.xlu0 %773
        %775 = vrot.lane.b32.xlu0 %v763, 96
        %v776 = vpop.permute.xlu0 %775
        %v779 = vsel %vm347, %v646, %v774
        %v780 = vsel %vm347, %v648, %v776
        %vm781 = vcmask 523264
        %v782 = vsel %vm781, %v779, 0.0
        %v783 = vsel %vm781, %v780, 0.0
        %v784 = vadd.f32 %v782, %v767
        %v785 = vadd.f32 %v783, %v768
        %786 = vst [vmem:[%s136] sm:$0xff] %v784
        %787 = vst [vmem:[%s136 + $0x8] sm:$0xff] %v785
        %s788 = sand.u32 %s71, 1
        %s789 = scalar_lea.sflag [#allocation3], %s788
        %s790 = sand.u32 %s71, 1
        %s791 = smul.addr %s790, 16
        %s792 = scalar_lea.vmem [#allocation2], %s791
        // Predicated region
        $region29: #{mpnn_lstm_forward.1} parent=27 // pred_check
          %p793 = pneg %p81
        $region30: #{mpnn_lstm_forward.1} parent=27 // pred_check_branch
          %795 = sbr.rel (%p793) target = $region32
        $region31: #{mpnn_lstm_forward.1} parent=27 // pred_region
          %s797 = ssub.s32 256, 256
          %798 = vsyncadd %s789, %s797
          %s799 = smul.addr %s16, 2
          %s800 = smul.addr %s799, 128
          %s801 = scalar_lea.hbm %s2, %s800
          %s802 = sshll.u32 %s792, 4
          %s803 = int_to_ptr.vmem [resolvable:$true] %s802
          %808 = dma.vmem_to_hbm [thread:$0]  %s803, 256, %s801, %s789, 128, 128, 8
        $region32: #{mpnn_lstm_forward.1} parent=27 // pred_fallthru
          _
      $region28: #{mpnn_lstm_forward.1} parent=5 // pred_fallthru
        _
      %p809 = scmp.le.s32.totalorder 2, %s11
      // Predicated region
      $region33: #{mpnn_lstm_forward.1} parent=5 // pred_check
        %p810 = pneg %p809
      $region34: #{mpnn_lstm_forward.1} parent=5 // pred_check_branch
        %812 = sbr.rel (%p810) target = $region36
      $region35: #{mpnn_lstm_forward.1} parent=5 // pred_region
        %s813 = ssub.s32 %s11, 2
        // Predicated region
        $region37: #{mpnn_lstm_forward.1} parent=35 // pred_check
          %p814 = pneg %p87
        $region38: #{mpnn_lstm_forward.1} parent=35 // pred_check_branch
          %816 = sbr.rel (%p814) target = $region40
        $region39: #{mpnn_lstm_forward.1} parent=35 // pred_region
          %s817 = sand.u32 %s72, 1
          %s818 = scalar_lea.sflag [#allocation3], %s817
          %s819 = sand.u32 %s72, 1
          %s820 = smul.addr %s819, 16
          %s821 = scalar_lea.vmem [#allocation2], %s820
          %822 = dma.done %s818, 256
        $region40: #{mpnn_lstm_forward.1} parent=35 // pred_fallthru
          _
      $region36: #{mpnn_lstm_forward.1} parent=5 // pred_fallthru
        _
    $region6: #{mpnn_lstm_forward.1} parent=1 // loop_footer
      %s15 = sadd.s32 1, %s11
    $region7: #{mpnn_lstm_forward.1} parent=1 // loop_footer_branch
      %10 = sbr.rel target = $region3
    $region8: #{mpnn_lstm_forward.1} parent=1 // loop_exit
      _
    %823 = vsyncpa [#allocation3], 1
    %s824 = scalar_lea.sflag [#allocation3], 1
    %825 = vsyncpa %s824, 1

</llo_original>
